<compile_context>
chip_gen: v7x
topology: tpu7x:2x2x1
jax: 0.10.0
libtpu: 0.0.40
codegen_flags: <defaults>
</compile_context>

<pallas_src>
import functools

import jax
import jax.numpy as jnp
from jax import lax
from jax.experimental import pallas as pl
from jax.experimental.pallas import tpu as pltpu

_LANES = 128


def _round_up(x, m):
    return (x + m - 1) // m * m


def _i32(v):
    """Python int (possibly >= 2**31) -> equivalent two's-complement int32."""
    v &= 0xFFFFFFFF
    if v >= 1 << 31:
        v -= 1 << 32
    return jnp.int32(v)


def _srl(x, k):
    """Logical right shift on int32."""
    return lax.shift_right_logical(x, jnp.int32(k))


def cdropout_kernel(seed_ref, x_ref, o_ref, *, threshold, scale, tile_rows):
    """Inverted dropout on one (tile_rows, 128) float32 tile.

    seed_ref : (1,) int32 scalar-prefetch ref (SMEM)
    x_ref    : (tile_rows, 128) float32
    o_ref    : (tile_rows, 128) float32

    Per-element uniform bits come from the lowbias32 hash of the element's
    global index XOR'd with seed * golden-ratio constant, so every tile (and
    every megacore shard) draws an independent, tiling-invariant stream.
    """
    pid = pl.program_id(0)
    shape = x_ref.shape
    row = lax.broadcasted_iota(jnp.int32, shape, 0)
    col = lax.broadcasted_iota(jnp.int32, shape, 1)
    gidx = (pid * tile_rows + row) * _LANES + col

    # Seed mixing with a large odd constant avoids the "seed s, tile i ==
    # seed s+1, tile i-1" correlation of additive seeding.
    h = gidx ^ (seed_ref[0] * _i32(0x9E3779B9))
    # lowbias32 finalizer (2 muls, 3 xor-shifts) -> well-mixed 32-bit output.
    h = h ^ _srl(h, 16)
    h = h * _i32(0x7FEB352D)
    h = h ^ _srl(h, 15)
    h = h * _i32(0x846CA68B)
    h = h ^ _srl(h, 16)

    # h is uniform over the full signed int32 range; keep with probability
    # (threshold + 2^31) / 2^32 == 1 - p via a single signed compare
    # (no int->float convert, no mask op).
    keep = h < jnp.int32(threshold)
    o_ref[...] = jnp.where(keep, x_ref[...] * scale, 0.0)


def _complex_to_pairs(x):
    """complex64 -> (..., 2) float32 in native interleaved [real, imag] order."""
    try:
        return lax.bitcast_convert_type(x, jnp.float32)   # free reinterpret
    except Exception:
        # Fallback: one fused elementwise pass (read complex, write f32 slab).
        return jnp.stack([jnp.real(x), jnp.imag(x)], axis=-1)


def _pairs_to_complex(pairs):
    """(..., 2) float32 [real, imag] -> complex64."""
    try:
        return lax.bitcast_convert_type(pairs, jnp.complex64)
    except Exception:
        return lax.complex(pairs[..., 0], pairs[..., 1])


def cdropout(x, *, p=0.5, seed=0, training=True, tile_rows=2048):
    """JAX/Pallas equivalent of CDropout.forward.

    training=False (or p<=0) -> identity, matching the PyTorch eval path.
    training=True            -> independent inverted dropout on real/imag parts.
    """
    if not training or p <= 0.0:
        return x
    if p >= 1.0:
        return jnp.zeros_like(x)

    orig_dtype = x.dtype
    orig_shape = x.shape
    # TODO(synk): complex128 inputs are processed in float32 precision (TPU).
    xc = x if x.dtype == jnp.complex64 else x.astype(jnp.complex64)

    pairs = _complex_to_pairs(xc)              # orig_shape + (2,), float32
    n = pairs.size
    flat = pairs.reshape(-1)                   # contiguous -> free reshape
    rows = pl.cdiv(n, _LANES)
    pad = rows * _LANES - n
    if pad:                                    # only when n % 128 != 0
        flat = jnp.pad(flat, (0, pad))
    slab = flat.reshape(rows, _LANES)          # lane-dense f32 slab

    # Sublane-aligned tiles, ~1 MiB blocks by default; clamp so the grid keeps
    # >=4 steps (2 TCs on v7x x 2 pipelined steps) for reasonably sized inputs.
    tile_rows = max(8, min(tile_rows, _round_up(pl.cdiv(rows, 4), 8)))
    grid = (pl.cdiv(rows, tile_rows),)

    # keep prob = 1 - p, expressed as a signed int32 threshold.
    threshold = min(int(round((1.0 - p) * float(1 << 32))) - (1 << 31),
                    (1 << 31) - 1)
    scale = 1.0 / (1.0 - p)
    seed_arr = jnp.asarray([seed], dtype=jnp.int32)

    out = pl.pallas_call(
        functools.partial(cdropout_kernel, threshold=threshold,
                          scale=float(scale), tile_rows=tile_rows),
        out_shape=jax.ShapeDtypeStruct((rows, _LANES), jnp.float32),
        grid_spec=pltpu.PrefetchScalarGridSpec(
            num_scalar_prefetch=1,
            grid=grid,
            in_specs=[pl.BlockSpec((tile_rows, _LANES), lambda i, seed: (i, 0))],
            out_specs=pl.BlockSpec((tile_rows, _LANES), lambda i, seed: (i, 0)),
        ),
        compiler_params=pltpu.CompilerParams(
            dimension_semantics=("parallel",),
        ),
    )(seed_arr, slab)

    out_flat = out.reshape(-1)
    if pad:
        out_flat = out_flat[:n]
    result = _pairs_to_complex(out_flat.reshape(orig_shape + (2,)))
    return result.astype(orig_dtype)


if __name__ == "__main__":
    key = jax.random.PRNGKey(0)
    k_re, k_im = jax.random.split(key)

    B, C, H, W = 2, 4, 16, 16
    xr = jax.random.normal(k_re, (B, C, H, W), dtype=jnp.float32)
    xi = jax.random.normal(k_im, (B, C, H, W), dtype=jnp.float32)
    x = lax.complex(xr, xi)                            # complex64 input

    p = 0.5
    # tile_rows=8 exercises a multi-step (pipelined) grid at these toy shapes;
    # the production default is 2048 rows (1 MiB blocks).
    drop = jax.jit(functools.partial(cdropout, p=p, seed=1234, training=True,
                                     tile_rows=8))
    out = jax.block_until_ready(drop(x))
    assert out.shape == x.shape and out.dtype == x.dtype

    # Every output element must be either 0 or the input scaled by 1/(1-p).
    scale = 1.0 / (1.0 - p)
    re, im = jnp.real(out), jnp.imag(out)
    ok_re = jnp.isclose(re, 0.0) | jnp.isclose(re, xr * scale, rtol=1e-5, atol=1e-6)
    ok_im = jnp.isclose(im, 0.0) | jnp.isclose(im, xi * scale, rtol=1e-5, atol=1e-6)
    assert bool(jnp.all(ok_re)) and bool(jnp.all(ok_im))

    # Keep fraction should be close to 1 - p.
    keep_frac = 0.5 * (float(jnp.mean(re != 0.0)) + float(jnp.mean(im != 0.0)))
    assert 0.35 < keep_frac < 0.65, keep_frac

    # Eval mode is the identity (no kernel launch), matching PyTorch.
    out_eval = cdropout(x, p=p, seed=1234, training=False)
    assert bool(jnp.array_equal(out_eval, x))

    print("KERNEL_OK")
</pallas_src>

<mosaic_0001>
module attributes {stable_mosaic.version = 11 : i64} {
  func.func @cdropout_kernel(%arg0: i32, %arg1: memref<1xi32, #tpu.memory_space<smem>>, %arg2: memref<8x128xf32, #tpu.memory_space<vmem>>, %arg3: memref<8x128xf32, #tpu.memory_space<vmem>>) attributes {dimension_semantics = [#tpu.dimension_semantics<parallel>], iteration_bounds = array<i64: 4>, scalar_prefetch = 1 : i64, scratch_operands = 0 : i64, tpu.core_type = #tpu.core_type<tc>, window_params = [{transform_indices = @transform_0, window_bounds = array<i64: 8, 128>}, {transform_indices = @transform_1, window_bounds = array<i64: 8, 128>}]} {
    %0 = tpu.iota {dimensions = array<i32: 0>} : vector<8x128xi32>
    %1 = tpu.iota {dimensions = array<i32: 1>} : vector<8x128xi32>
    %c8_i32 = arith.constant 8 : i32
    %2 = arith.muli %arg0, %c8_i32 : i32
    %3 = vector.broadcast %2 : i32 to vector<8x128xi32>
    %4 = arith.addi %3, %0 : vector<8x128xi32>
    %c128_i32 = arith.constant 128 : i32
    %5 = vector.broadcast %c128_i32 : i32 to vector<8x128xi32>
    %6 = arith.muli %4, %5 : vector<8x128xi32>
    %7 = arith.addi %6, %1 : vector<8x128xi32>
    %c0 = arith.constant 0 : index
    %8 = memref.load %arg1[%c0] : memref<1xi32, #tpu.memory_space<smem>>
    %c-1640531527_i32 = arith.constant -1640531527 : i32
    %9 = arith.muli %8, %c-1640531527_i32 : i32
    %10 = vector.broadcast %9 : i32 to vector<8x128xi32>
    %11 = arith.xori %7, %10 : vector<8x128xi32>
    %c16_i32 = arith.constant 16 : i32
    %12 = vector.broadcast %c16_i32 : i32 to vector<8x128xi32>
    %13 = arith.shrui %11, %12 : vector<8x128xi32>
    %14 = arith.xori %11, %13 : vector<8x128xi32>
    %c2146121005_i32 = arith.constant 2146121005 : i32
    %15 = vector.broadcast %c2146121005_i32 : i32 to vector<8x128xi32>
    %16 = arith.muli %14, %15 : vector<8x128xi32>
    %c15_i32 = arith.constant 15 : i32
    %17 = vector.broadcast %c15_i32 : i32 to vector<8x128xi32>
    %18 = arith.shrui %16, %17 : vector<8x128xi32>
    %19 = arith.xori %16, %18 : vector<8x128xi32>
    %c-2073254261_i32 = arith.constant -2073254261 : i32
    %20 = vector.broadcast %c-2073254261_i32 : i32 to vector<8x128xi32>
    %21 = arith.muli %19, %20 : vector<8x128xi32>
    %c16_i32_0 = arith.constant 16 : i32
    %22 = vector.broadcast %c16_i32_0 : i32 to vector<8x128xi32>
    %23 = arith.shrui %21, %22 : vector<8x128xi32>
    %24 = arith.xori %21, %23 : vector<8x128xi32>
    %c0_i32 = arith.constant 0 : i32
    %25 = vector.broadcast %c0_i32 : i32 to vector<8x128xi32>
    %26 = arith.cmpi slt, %24, %25 : vector<8x128xi32>
    %c0_1 = arith.constant 0 : index
    %c0_2 = arith.constant 0 : index
    %27 = vector.load %arg2[%c0_1, %c0_2] : memref<8x128xf32, #tpu.memory_space<vmem>>, vector<8x128xf32>
    %cst = arith.constant 2.000000e+00 : f32
    %28 = vector.broadcast %cst : f32 to vector<8x128xf32>
    %29 = arith.mulf %27, %28 : vector<8x128xf32>
    %cst_3 = arith.constant 0.000000e+00 : f32
    %30 = vector.broadcast %cst_3 : f32 to vector<8x128xf32>
    %31 = arith.select %26, %29, %30 : vector<8x128xi1>, vector<8x128xf32>
    %c0_4 = arith.constant 0 : index
    %c0_5 = arith.constant 0 : index
    %32 = vector.load %arg3[%c0_4, %c0_5] : memref<8x128xf32, #tpu.memory_space<vmem>>, vector<8x128xf32>
    tpu.vector_store %arg3[%c0_4, %c0_5], %31 {strides = array<i32>} : memref<8x128xf32, #tpu.memory_space<vmem>>, vector<8x128xf32>,
    return
  }
  func.func @transform_0(%arg0: i32, %arg1: memref<1xi32, #tpu.memory_space<smem>>) -> (i32, i32) {
    %c0_i32 = arith.constant 0 : i32
    %c0_i32_0 = arith.constant 0 : i32
    return %arg0, %c0_i32 : i32, i32
  }
  func.func @transform_1(%arg0: i32, %arg1: memref<1xi32, #tpu.memory_space<smem>>) -> (i32, i32) {
    %c0_i32 = arith.constant 0 : i32
    %c0_i32_0 = arith.constant 0 : i32
    return %arg0, %c0_i32 : i32, i32
  }
}

</mosaic_0001>

<llo_original>
// kernel: custom-call.1
$region0: #{custom-call.1}
  %s0 = inlined_call_operand.hbm [shape: c64[2,4,16,16], index: 0, kind: input, shape index: {}]
  %s1 = inlined_call_operand.vmem [shape: f32[2,4,16,16], index: 1, kind: output, shape index: {}]
  %s2 = scalar_lea.hbm %s0, 2048
  $region1: #{custom-call.1} parent=0
    #allocation0 [shape = 's32[1]{0}', space=sflag, size = 0x4, scoped, tag = 'scoped memory for custom-call.1']
    %3 = vsyncpa [#allocation0], 0
    %s4 = sshll.u32 %s1, 4
    %s5 = int_to_ptr.vmem [resolvable:$true] %s4
    %7 = dma.hbm_to_vmem [thread:$0]  %s2, 2048, %s5, [#allocation0]
    %8 = dma.done [#allocation0], 2048
    %9 = vsyncpa [#allocation0], 1

// kernel: custom-call
$region0: #{custom-call}
  %s0 = inlined_call_operand.hbm [shape: c64[2,4,16,16], index: 0, kind: input, shape index: {}]
  %s1 = inlined_call_operand.vmem [shape: f32[2,4,16,16], index: 1, kind: output, shape index: {}]
  $region1: #{custom-call} parent=0
    #allocation0 [shape = 's32[1]{0}', space=sflag, size = 0x4, scoped, tag = 'scoped memory for custom-call']
    %2 = vsyncpa [#allocation0], 0
    %s3 = sshll.u32 %s1, 4
    %s4 = int_to_ptr.vmem [resolvable:$true] %s3
    %6 = dma.hbm_to_vmem [thread:$0]  %s0, 2048, %s4, [#allocation0]
    %7 = dma.done [#allocation0], 2048
    %8 = vsyncpa [#allocation0], 1

// kernel: cdropout.1
$region0: #{cdropout.1}
  #allocation0 [shape = 'u32[]', space=smem, size = 0x4, offset = 0x4, fixed_abs, tag = 'smem constant byte address 0x4 - core index']
  #allocation1 [shape = 'u32[144,128]{1,0:T(1,128)}', space=vmem, size = 0x12000, scoped, tag = 'internal scratch']
  #allocation2 [shape = 's32[1]{0}', space=sflag, size = 0x4, scoped, tag = 'scoped memory for cdropout.1']
  #allocation3 [shape = 's32[1]{0:T(128)S(6)}', space=smem, size = 0x200, scoped, tag = 'prefetched SMEM operand 0']
  %s0 = inlined_call_operand.<no memory space> [shape: s32[1], index: 0, kind: input, shape index: {}]
  %s1 = inlined_call_operand.vmem [shape: f32[32,128], index: 1, kind: input, shape index: {}]
  %s2 = inlined_call_operand.vmem [shape: f32[32,128], index: 2, kind: output, shape index: {}]
  %s3 = sld [smem:[#allocation0]]
  $region37: #{cdropout.1} parent=0
    _
  %s5 = ssub.s32 1, %s3
  %s6 = scalar_select 0, %s5, %s3
  %7 = sst [smem:[#allocation3]] %s0
  loop: start=0, step=1, limit=6
  $region2: #{cdropout.1} parent=0 // loop_pre_header
    _
  $region3: #{cdropout.1} parent=0 // loop_header
    %s9 = sphi 0, %s13
    %p10 = scmp.ge.s32.totalorder %s9, 6
    %s19 = sphi 0, %s21
    %s22 = sphi 0, %s19
    %s23 = sphi 0, %s22
    %s39 = sphi 0, %s23
    %s45 = sphi 0, %s47
    %s48 = sphi 0, %s45
    %s49 = sphi 0, %s48
    %s65 = sphi 0, %s49
  $region4: #{cdropout.1} parent=0 // loop_header_branch
    %12 = sbr.rel (%p10) target = $region8
  $region5: #{cdropout.1} parent=0 // loop_body
    %s14 = ssub.s32 %s9, 1
    %s15 = ssub.s32 %s9, 2
    %s16 = sadd.s32 %s9, 1
    %s17 = ssub.s32 %s9, %s16
    %p18 = scmp.eq.s32.totalorder %s17, 0
    %s20 = sadd.s32 %s19, 1
    %s21 = scalar_select %p18, %s19, %s20
    %p24 = pneg %p18
    %p25 = scmp.eq.s32.totalorder %s9, 3
    %p26 = por %p24, %p25
    %p27 = scmp.ne.s32.totalorder %s19, %s22
    %p28 = scmp.eq.s32.totalorder %s9, 0
    %p29 = por %p27, %p28
    %p30 = scmp.ne.s32.totalorder %s19, %s22
    %p31 = scmp.eq.s32.totalorder %s14, 3
    %p32 = por %p30, %p31
    %p33 = scmp.ne.s32.totalorder %s22, %s23
    %p34 = scmp.eq.s32.totalorder %s14, 0
    %p35 = por %p33, %p34
    %p36 = scmp.ne.s32.totalorder %s22, %s23
    %p37 = scmp.eq.s32.totalorder %s15, 3
    %p38 = por %p36, %p37
    %p40 = scmp.ne.s32.totalorder %s23, %s39
    %p41 = scmp.eq.s32.totalorder %s15, 0
    %p42 = por %p40, %p41
    %s43 = ssub.s32 %s9, %s16
    %p44 = scmp.eq.s32.totalorder %s43, 0
    %s46 = sadd.s32 %s45, 1
    %s47 = scalar_select %p44, %s45, %s46
    %p50 = pneg %p44
    %p51 = scmp.eq.s32.totalorder %s9, 3
    %p52 = por %p50, %p51
    %p53 = scmp.ne.s32.totalorder %s45, %s48
    %p54 = scmp.eq.s32.totalorder %s9, 0
    %p55 = por %p53, %p54
    %p56 = scmp.ne.s32.totalorder %s45, %s48
    %p57 = scmp.eq.s32.totalorder %s14, 3
    %p58 = por %p56, %p57
    %p59 = scmp.ne.s32.totalorder %s48, %s49
    %p60 = scmp.eq.s32.totalorder %s14, 0
    %p61 = por %p59, %p60
    %p62 = scmp.ne.s32.totalorder %s48, %s49
    %p63 = scmp.eq.s32.totalorder %s15, 3
    %p64 = por %p62, %p63
    %p66 = scmp.ne.s32.totalorder %s49, %s65
    %p67 = scmp.eq.s32.totalorder %s15, 0
    %p68 = por %p66, %p67
    %p69 = scmp.le.s32.totalorder 1, %s9
    %p70 = scmp.lt.s32.totalorder %s9, 5
    %p71 = pnand %p69, %p70
    %p72 = pneg %p71
    // Predicated region
    $region9: #{cdropout.1} parent=5 // pred_check
      _
    $region10: #{cdropout.1} parent=5 // pred_check_branch
      %74 = sbr.rel (%p71) target = $region12
    $region11: #{cdropout.1} parent=5 // pred_region
      %s75 = ssub.s32 %s9, 1
    $region12: #{cdropout.1} parent=5 // pred_fallthru
      _
    %p76 = scmp.lt.s32.totalorder %s9, 4
    // Predicated region
    $region13: #{cdropout.1} parent=5 // pred_check
      %p77 = pneg %p76
    $region14: #{cdropout.1} parent=5 // pred_check_branch
      %79 = sbr.rel (%p77) target = $region16
    $region15: #{cdropout.1} parent=5 // pred_region
      // Predicated region
      $region17: #{cdropout.1} parent=15 // pred_check
        %p80 = pneg %p29
      $region18: #{cdropout.1} parent=15 // pred_check_branch
        %82 = sbr.rel (%p80) target = $region20
      $region19: #{cdropout.1} parent=15 // pred_region
        %p83 = scmp.lt.s32.totalorder %s9, 3
        %s84 = scalar_select %p83, %s9, 3
        %s85 = smul.addr %s84, 8
        %s86 = scalar_lea.vmem %s1, %s85
      $region20: #{cdropout.1} parent=15 // pred_fallthru
        _
    $region16: #{cdropout.1} parent=5 // pred_fallthru
      _
    %p87 = scmp.le.s32.totalorder 1, %s9
    %p88 = scmp.lt.s32.totalorder %s9, 5
    %p89 = pnand %p87, %p88
    %p90 = pneg %p89
    // Predicated region
    $region21: #{cdropout.1} parent=5 // pred_check
      _
    $region22: #{cdropout.1} parent=5 // pred_check_branch
      %92 = sbr.rel (%p89) target = $region24
    $region23: #{cdropout.1} parent=5 // pred_region
      %s93 = ssub.s32 %s9, 1
      %p94 = scmp.lt.s32.totalorder %s14, 3
      %s95 = scalar_select %p94, %s14, 3
      %s96 = smul.addr %s95, 8
      %s97 = scalar_lea.vmem %s1, %s96
      %p98 = pneg %p35
      %p99 = pneg %p32
      %p100 = pneg %p61
      %p101 = pneg %p58
      %p102 = scmp.lt.s32.totalorder %s14, 3
      %s103 = scalar_select %p102, %s14, 3
      %s104 = smul.addr %s103, 8
      %s105 = scalar_lea.vmem %s2, %s104
      %p106 = scmp.lt.s32.totalorder %s14, 3
      %s107 = scalar_select %p106, %s14, 3
      %s108 = smul.addr %s107, 8
      %s109 = scalar_lea.vmem %s1, %s108
      %p110 = scmp.lt.s32.totalorder %s14, 3
      %s111 = scalar_select %p110, %s14, 3
      %s112 = smul.addr %s111, 8
      %s113 = scalar_lea.vmem %s2, %s112
      %v114 = vlaneseq
      %v115 = vshrl.u32 %v114, 7
      %v116 = vlaneseq
      %v117 = vand.u32 %v116, 127
      %s118 = smul.u32 %s14, 8
      %v119 = vstv %s118
      %v120 = vadd.s32 %v119, %v115
      %v121 = vmul.u32 %v120, 128
      %v122 = vadd.s32 %v121, %v117
      %s123 = sld [smem:[#allocation3]]
      %s124 = smul.u32 %s123, 2654435769
      %v125 = vstv %s124
      %v126 = vxor.u32 %v122, %v125
      %v127 = vshrl.u32 %v126, 16
      %v128 = vxor.u32 %v126, %v127
      %v129 = vmul.u32 %v128, 2146121005
      %v130 = vshrl.u32 %v129, 15
      %v131 = vxor.u32 %v129, %v130
      %v132 = vmul.u32 %v131, 2221713035
      %v133 = vshrl.u32 %v132, 16
      %v134 = vxor.u32 %v132, %v133
      %vm135 = vcmp.lt.s32.totalorder %v134, 0
      %v136 = vld [vmem:[%s109] sm:$0xff]
      %v137 = vmul.f32 %v136, 2.0
      %v138 = vsel %vm135, %v137, 0.0
      %139 = vst [vmem:[%s113] sm:$0xff] %v138
      %p140 = scmp.lt.s32.totalorder %s14, 3
      %s141 = scalar_select %p140, %s14, 3
      %s142 = smul.addr %s141, 8
      %s143 = scalar_lea.vmem %s2, %s142
      // Predicated region
      $region25: #{cdropout.1} parent=23 // pred_check
        %p144 = pneg %p58
      $region26: #{cdropout.1} parent=23 // pred_check_branch
        %146 = sbr.rel (%p144) target = $region28
      $region27: #{cdropout.1} parent=23 // pred_region
        _
      $region28: #{cdropout.1} parent=23 // pred_fallthru
        _
    $region24: #{cdropout.1} parent=5 // pred_fallthru
      _
    %p147 = scmp.le.s32.totalorder 2, %s9
    // Predicated region
    $region29: #{cdropout.1} parent=5 // pred_check
      %p148 = pneg %p147
    $region30: #{cdropout.1} parent=5 // pred_check_branch
      %150 = sbr.rel (%p148) target = $region32
    $region31: #{cdropout.1} parent=5 // pred_region
      %s151 = ssub.s32 %s9, 2
      // Predicated region
      $region33: #{cdropout.1} parent=31 // pred_check
        %p152 = pneg %p64
      $region34: #{cdropout.1} parent=31 // pred_check_branch
        %154 = sbr.rel (%p152) target = $region36
      $region35: #{cdropout.1} parent=31 // pred_region
        %p155 = scmp.lt.s32.totalorder %s15, 3
        %s156 = scalar_select %p155, %s15, 3
        %s157 = smul.addr %s156, 8
        %s158 = scalar_lea.vmem %s2, %s157
      $region36: #{cdropout.1} parent=31 // pred_fallthru
        _
    $region32: #{cdropout.1} parent=5 // pred_fallthru
      _
  $region6: #{cdropout.1} parent=0 // loop_footer
    %s13 = sadd.s32 1, %s9
  $region7: #{cdropout.1} parent=0 // loop_footer_branch
    %8 = sbr.rel target = $region3
  $region8: #{cdropout.1} parent=0 // loop_exit
    _

// kernel: custom-call.2
$region0: #{custom-call.2}
  %s0 = inlined_call_operand.vmem [shape: f32[2,4,16,16], index: 0, kind: input, shape index: {}]
  %s1 = inlined_call_operand.vmem [shape: f32[2,4,16,16], index: 1, kind: input, shape index: {}]
  %s2 = inlined_call_operand.hbm [shape: c64[2,4,16,16], index: 2, kind: output, shape index: {}]
  %s3 = scalar_lea.hbm %s2, 2048
  $region1: #{custom-call.2} parent=0
    #allocation0 [shape = 's32[1]{0}', space=sflag, size = 0x4, scoped, tag = 'scoped memory for custom-call.2']
    %4 = vsyncpa [#allocation0], 0
    %s5 = sshll.u32 %s0, 4
    %s6 = int_to_ptr.vmem [resolvable:$true] %s5
    %8 = dma.vmem_to_hbm [thread:$0]  %s6, 2048, %s2, [#allocation0]
    %9 = dma.done [#allocation0], 2048
    %10 = vsyncpa [#allocation0], 1
  $region2: #{custom-call.2} parent=0
    #allocation1 [shape = 's32[1]{0}', space=sflag, size = 0x4, scoped, tag = 'scoped memory for custom-call.2']
    %11 = vsyncpa [#allocation1], 0
    %s12 = sshll.u32 %s1, 4
    %s13 = int_to_ptr.vmem [resolvable:$true] %s12
    %15 = dma.vmem_to_hbm [thread:$0]  %s13, 2048, %s3, [#allocation1]
    %16 = dma.done [#allocation1], 2048
    %17 = vsyncpa [#allocation1], 1

</llo_original>
